<compile_context>
chip_gen: v5e
topology: v5e:2x2
jax: 0.10.0
libtpu: 0.0.40
codegen_flags: <defaults>
</compile_context>

<pallas_src>
import functools

import jax
import jax.numpy as jnp
from jax.experimental import pallas as pl
from jax.experimental.pallas import tpu as pltpu


def _round_up(v, m):
    return ((v + m - 1) // m) * m


def _device_kind():
    try:
        return jax.devices()[0].device_kind.lower()
    except Exception:
        return ""


def _vmem_capacity_bytes():
    try:
        return int(pltpu.get_tpu_info().vmem_capacity_bytes)
    except Exception:
        return 64 << 20  # conservative (v7x-sized) fallback


def _pick_block_b(B, per_b_bytes, target_bytes, min_steps):
    """Largest batch block that divides B, keeps input bytes <= target, and (when
    possible) leaves >= min_steps grid steps so all TensorCores get work."""
    cap = max(1, target_bytes // max(per_b_bytes, 1))
    divisors = [d for d in range(1, B + 1) if B % d == 0]
    fit = [d for d in divisors if d <= cap] or [1]
    pref = [d for d in fit if B // d >= min_steps]
    return max(pref) if pref else max(fit)


def _se_kernel(x_ref, w1_ref, w2_ref, o_ref, *, mul_in_f32):
    """Fused SE block, one batch-block per grid step.

    x_ref  : (Bb, R, L)  streaming tile; L is the lane-dense minor dim
    w1_ref : (L, H)      W1^T, channel-tiled to L lanes, 1/N folded in, padded to H
    w2_ref : (H, L)      W2^T, columns channel-tiled to L lanes, rows padded to H
    o_ref  : (Bb, R, L)  out = x * sigmoid(relu(mean(x) @ W1^T) @ W2^T)
    """
    # squeeze: per-lane sum over rows, f32 accumulation with the cast in flight
    # (no materialized f32 copy of the tile).
    ssum = jnp.sum(x_ref[...].astype(jnp.float32), axis=1)              # (Bb, L)

    # excitation bottleneck: two tiny MXU matmuls + sigmoid.  1/N is folded into
    # w1, so ssum @ w1 == mean_N(x) @ W1^T; zero-padded hidden units are inert.
    h = jnp.dot(ssum, w1_ref[...], preferred_element_type=jnp.float32)  # (Bb, H)
    h = jnp.maximum(h, 0.0)
    z = jnp.dot(h, w2_ref[...], preferred_element_type=jnp.float32)     # (Bb, L)
    s = jax.nn.sigmoid(z)                                               # (Bb, L)

    # excite: broadcast the per-lane scale over the rows of the streaming tile.
    if mul_in_f32:
        o_ref[...] = (x_ref[...].astype(jnp.float32) * s[:, None, :]).astype(o_ref.dtype)
    else:
        # bf16 multiply on bf16-VALU chips: halves vld/vst traffic on the
        # streaming path.
        o_ref[...] = x_ref[...] * s[:, None, :].astype(o_ref.dtype)


def se_layer_forward(x, w1, w2, block_b=None):
    """x: (B, N, C); w1: (Cr, C), w2: (C, Cr) in torch nn.Linear layout (bias-free)."""
    B, N, C = x.shape
    Cr = w1.shape[0]
    assert w1.shape == (Cr, C), f"w1 shape {w1.shape} != ({Cr}, {C})"
    assert w2.shape == (C, Cr), f"w2 shape {w2.shape} != ({C}, {Cr})"

    # ---- weight prep (tiny, once, in the wrapper) ---------------------------
    H = _round_up(max(Cr, 1), 128)  # bottleneck padded to a lane-dense 128
    w1_t = jnp.zeros((C, H), jnp.float32).at[:, :Cr].set(jnp.asarray(w1, jnp.float32).T)
    w2_t = jnp.zeros((H, C), jnp.float32).at[:Cr, :].set(jnp.asarray(w2, jnp.float32).T)
    w1_t = w1_t / float(N)          # fold the 1/N of the mean into W1

    # ---- lane-dense view of the streaming tensor ----------------------------
    # If C divides 128, view (B, N, C) as (B, N*C//128, 128): a free contiguous
    # reshape.  Lane l then always holds channel l % C, so the weights are tiled
    # along channels to 128 lanes and the sigmoid scale is already lane-tiled.
    lane_dense = (C <= 128) and (128 % C == 0) and ((N * C) % 128 == 0)
    if lane_dense:
        k = 128 // C
        L, R = 128, (N * C) // 128
        x_view = x.reshape(B, R, L)
        w1_k = jnp.tile(w1_t, (k, 1))   # (128, H): row l == w1_t[l % C]
        w2_k = jnp.tile(w2_t, (1, k))   # (H, 128): col l == w2_t[:, l % C]
    else:
        # Fallback (C not a divisor of 128): correct, but stores are only
        # lane-dense if C itself is a multiple of 128.
        L, R = C, N
        x_view = x
        w1_k, w2_k = w1_t, w2_t

    # ---- block / VMEM sizing (generation-aware) -----------------------------
    itemsize = jnp.dtype(x.dtype).itemsize
    per_b = R * L * itemsize
    vmem_cap = _vmem_capacity_bytes()
    if vmem_cap <= 80 << 20:            # v7x: 64 MiB VMEM, ~2x v6e HBM BW
        target, min_steps, limit_cap = 6 << 20, 4, 48 << 20
    else:                               # v5e / v6e: 128 MiB VMEM
        target, min_steps, limit_cap = 8 << 20, 2, 96 << 20

    Bb = block_b if block_b is not None else _pick_block_b(B, per_b, target, min_steps)
    assert B % Bb == 0
    grid = (B // Bb,)

    # double-buffered in + out blocks + weights + headroom (no in-kernel f32 tile
    # copy anymore, so this accounting is complete).
    block_bytes = Bb * per_b
    weight_bytes = int(w1_k.size + w2_k.size) * 4
    vmem_bytes = 4 * block_bytes + 2 * weight_bytes + (4 << 20)
    vmem_bytes = int(min(max(vmem_bytes, 24 << 20), limit_cap))

    # f32 inputs multiply in f32 (no-op either way); bf16/fp8 inputs multiply in
    # their own dtype on bf16-VALU chips (v6e/v7x), in f32 on v5e.
    mul_in_f32 = (x.dtype == jnp.float32) or ("v5" in _device_kind())
    kernel = functools.partial(_se_kernel, mul_in_f32=mul_in_f32)

    out = pl.pallas_call(
        kernel,
        out_shape=jax.ShapeDtypeStruct((B, R, L), x.dtype),
        grid_spec=pltpu.PrefetchScalarGridSpec(
            num_scalar_prefetch=0,
            grid=grid,
            in_specs=[
                pl.BlockSpec((Bb, R, L), lambda b: (b, 0, 0)),
                pl.BlockSpec((L, H), lambda b: (0, 0)),
                pl.BlockSpec((H, L), lambda b: (0, 0)),
            ],
            out_specs=pl.BlockSpec((Bb, R, L), lambda b: (b, 0, 0)),
        ),
        compiler_params=pltpu.CompilerParams(
            dimension_semantics=("parallel",),
            vmem_limit_bytes=vmem_bytes,
        ),
    )(x_view, w1_k, w2_k)

    return out.reshape(B, N, C)


def _reference(x, w1, w2):
    """Pure-JAX reference matching the torch SELayer forward."""
    xf = x.astype(jnp.float32)
    y = jnp.mean(xf, axis=1)                                   # (B, C)
    h = jnp.maximum(y @ jnp.asarray(w1, jnp.float32).T, 0.0)   # (B, Cr)
    z = h @ jnp.asarray(w2, jnp.float32).T                     # (B, C)
    s = jax.nn.sigmoid(z)
    return (xf * s[:, None, :]).astype(x.dtype)


if __name__ == "__main__":
    # small shapes: batch=2, seq=64, channel=32, reduction=16 -> bottleneck=2
    B, N, C, RED = 2, 64, 32, 16
    Cr = C // RED

    key = jax.random.PRNGKey(0)
    kx, k1, k2 = jax.random.split(key, 3)

    x = jax.random.normal(kx, (B, N, C), dtype=jnp.float32)
    # deterministic synthetic parameters in torch nn.Linear layout (bias=False)
    w1 = (1.0 / jnp.sqrt(C)) * jax.random.normal(k1, (Cr, C), dtype=jnp.float32)
    w2 = (1.0 / jnp.sqrt(Cr)) * jax.random.normal(k2, (C, Cr), dtype=jnp.float32)

    out = se_layer_forward(x, w1, w2)
    out = jax.block_until_ready(out)

    ref = _reference(x, w1, w2)
    assert out.shape == (B, N, C)
    assert jnp.allclose(out, ref, atol=1e-5, rtol=1e-5), "mismatch vs reference"

    print("KERNEL_OK")
</pallas_src>

<mosaic_0001>
module attributes {stable_mosaic.version = 11 : i64} {
  func.func @_se_kernel(%arg0: i32, %arg1: memref<2x16x128xf32, #tpu.memory_space<vmem>>, %arg2: memref<128x128xf32, #tpu.memory_space<vmem>>, %arg3: memref<128x128xf32, #tpu.memory_space<vmem>>, %arg4: memref<2x16x128xf32, #tpu.memory_space<vmem>>) attributes {dimension_semantics = [#tpu.dimension_semantics<parallel>], iteration_bounds = array<i64: 1>, scalar_prefetch = 0 : i64, scratch_operands = 0 : i64, tpu.core_type = #tpu.core_type<tc>, window_params = [{transform_indices = @transform_0, window_bounds = array<i64: 2, 16, 128>}, {pipeline_mode = #tpu.pipeline_mode<synchronous>, transform_indices = @transform_1, window_bounds = array<i64: 128, 128>}, {pipeline_mode = #tpu.pipeline_mode<synchronous>, transform_indices = @transform_2, window_bounds = array<i64: 128, 128>}, {transform_indices = @transform_3, window_bounds = array<i64: 2, 16, 128>}]} {
    %c0 = arith.constant 0 : index
    %c0_0 = arith.constant 0 : index
    %c0_1 = arith.constant 0 : index
    %0 = vector.load %arg1[%c0, %c0_0, %c0_1] : memref<2x16x128xf32, #tpu.memory_space<vmem>>, vector<2x16x128xf32>
    %cst = arith.constant dense<0.000000e+00> : vector<2x128xf32>
    %1 = vector.multi_reduction <add>, %0, %cst [1] : vector<2x16x128xf32> to vector<2x128xf32>
    %c0_2 = arith.constant 0 : index
    %c0_3 = arith.constant 0 : index
    %2 = vector.load %arg2[%c0_2, %c0_3] : memref<128x128xf32, #tpu.memory_space<vmem>>, vector<128x128xf32>
    %cst_4 = arith.constant dense<0.000000e+00> : vector<2x128xf32>
    %3 = tpu.matmul %1, %2, %cst_4 {dimension_numbers = #tpu.dot_dimension_numbers<[1], [0], [0], [1], [0, 0, 1, 1], [], []>} : vector<2x128xf32>, vector<128x128xf32>, vector<2x128xf32> -> vector<2x128xf32>
    %cst_5 = arith.constant 0.000000e+00 : f32
    %4 = vector.broadcast %cst_5 : f32 to vector<2x128xf32>
    %5 = arith.maximumf %3, %4 : vector<2x128xf32>
    %c0_6 = arith.constant 0 : index
    %c0_7 = arith.constant 0 : index
    %6 = vector.load %arg3[%c0_6, %c0_7] : memref<128x128xf32, #tpu.memory_space<vmem>>, vector<128x128xf32>
    %cst_8 = arith.constant dense<0.000000e+00> : vector<2x128xf32>
    %7 = tpu.matmul %5, %6, %cst_8 {dimension_numbers = #tpu.dot_dimension_numbers<[1], [0], [0], [1], [0, 0, 1, 1], [], []>} : vector<2x128xf32>, vector<128x128xf32>, vector<2x128xf32> -> vector<2x128xf32>
    %8 = arith.negf %7 : vector<2x128xf32>
    %9 = math.exp %8 : vector<2x128xf32>
    %cst_9 = arith.constant 1.000000e+00 : f32
    %10 = vector.broadcast %cst_9 : f32 to vector<2x128xf32>
    %11 = arith.addf %10, %9 : vector<2x128xf32>
    %12 = arith.divf %10, %11 : vector<2x128xf32>
    %c0_10 = arith.constant 0 : index
    %c0_11 = arith.constant 0 : index
    %c0_12 = arith.constant 0 : index
    %13 = vector.load %arg1[%c0_10, %c0_11, %c0_12] : memref<2x16x128xf32, #tpu.memory_space<vmem>>, vector<2x16x128xf32>
    %14 = vector.shape_cast %12 : vector<2x128xf32> to vector<2x1x128xf32>
    %15 = vector.broadcast %14 : vector<2x1x128xf32> to vector<2x16x128xf32>
    %16 = arith.mulf %13, %15 : vector<2x16x128xf32>
    %c0_13 = arith.constant 0 : index
    %c0_14 = arith.constant 0 : index
    %c0_15 = arith.constant 0 : index
    %17 = vector.load %arg4[%c0_13, %c0_14, %c0_15] : memref<2x16x128xf32, #tpu.memory_space<vmem>>, vector<2x16x128xf32>
    tpu.vector_store %arg4[%c0_13, %c0_14, %c0_15], %16 {strides = array<i32>} : memref<2x16x128xf32, #tpu.memory_space<vmem>>, vector<2x16x128xf32>,
    return
  }
  func.func @transform_0(%arg0: i32) -> (i32, i32, i32) {
    %c0_i32 = arith.constant 0 : i32
    %c0_i32_0 = arith.constant 0 : i32
    %c0_i32_1 = arith.constant 0 : i32
    return %arg0, %c0_i32, %c0_i32_0 : i32, i32, i32
  }
  func.func @transform_1(%arg0: i32) -> (i32, i32) {
    %c0_i32 = arith.constant 0 : i32
    %c0_i32_0 = arith.constant 0 : i32
    %c0_i32_1 = arith.constant 0 : i32
    return %c0_i32, %c0_i32_0 : i32, i32
  }
  func.func @transform_2(%arg0: i32) -> (i32, i32) {
    %c0_i32 = arith.constant 0 : i32
    %c0_i32_0 = arith.constant 0 : i32
    %c0_i32_1 = arith.constant 0 : i32
    return %c0_i32, %c0_i32_0 : i32, i32
  }
  func.func @transform_3(%arg0: i32) -> (i32, i32, i32) {
    %c0_i32 = arith.constant 0 : i32
    %c0_i32_0 = arith.constant 0 : i32
    %c0_i32_1 = arith.constant 0 : i32
    return %arg0, %c0_i32, %c0_i32_0 : i32, i32, i32
  }
}

</mosaic_0001>

<llo_original>
// kernel: tpu_custom_call.1
$region0: #{tpu_custom_call.1}
  #allocation0 [shape = 'u32[]', space=smem, size = 0x4, offset = 0x4, fixed_abs, tag = 'smem constant byte address 0x4 - core index']
  #allocation1 [shape = 'u32[72,128]{1,0:T(1,128)}', space=vmem, size = 0x9000, scoped, tag = 'internal scratch']
  %s0 = inlined_call_operand.hbm [shape: f32[2,16,128], index: 0, kind: input, shape index: {}]
  %s1 = inlined_call_operand.hbm [shape: f32[128,128], index: 1, kind: input, shape index: {}]
  %s2 = inlined_call_operand.hbm [shape: f32[128,128], index: 2, kind: input, shape index: {}]
  %s3 = inlined_call_operand.hbm [shape: f32[2,16,128], index: 3, kind: output, shape index: {}]
  %s4 = sld [smem:[#allocation0]]
  $region34: #{tpu_custom_call.1} parent=0
    _
  %s6 = ssub.s32 1, %s4
  %s7 = scalar_select 0, %s6, %s4
  $region1: #{tpu_custom_call.1} parent=0
    #allocation2 [shape = 'u8[16384]{0}', space=vmem, size = 0x4000, scoped, tag = 'input window, operand 0, single buffered']
    #allocation3 [shape = 's32[1]{0}', space=sflag, size = 0x4, scoped, tag = 'scoped memory for tpu_custom_call.1']
    #allocation4 [shape = 's32[1]{0}', space=sflag, size = 0x4, scoped, tag = 'scoped memory for tpu_custom_call.1']
    #allocation5 [shape = 'u8[65536]{0}', space=vmem, size = 0x10000, scoped, tag = 'input window, operand 1, single buffered']
    #allocation6 [shape = 's32[1]{0}', space=sflag, size = 0x4, scoped, tag = 'scoped memory for tpu_custom_call.1']
    #allocation7 [shape = 'u8[65536]{0}', space=vmem, size = 0x10000, scoped, tag = 'input window, operand 2, single buffered']
    #allocation8 [shape = 'u8[16384]{0}', space=vmem, size = 0x4000, scoped, tag = 'output window, operand 0, single buffered']
    %8 = vsyncpa [#allocation3], 0
    %9 = vsyncpa [#allocation6], 0
    %10 = vsyncpa [#allocation4], 0
    // Predicated region
    $region2: #{tpu_custom_call.1} parent=1 // pred_check
      _
    $region3: #{tpu_custom_call.1} parent=1 // pred_check_branch
      %12 = sbr.rel (0) target = $region5
    $region4: #{tpu_custom_call.1} parent=1 // pred_region
      %14 = vsyncadd [#allocation3], 0
      %s15 = sshll.u32 %s0, 4
      %s16 = int_to_ptr.hbm [resolvable:$true] %s15
      %s17 = sshll.u32 [#allocation2], 4
      %s18 = int_to_ptr.vmem [resolvable:$true] %s17
      %23 = dma.hbm_to_vmem [thread:$0]  %s16, 512, %s18, [#allocation3], 128, 128, 8
    $region5: #{tpu_custom_call.1} parent=1 // pred_fallthru
      _
    // Predicated region
    $region6: #{tpu_custom_call.1} parent=1 // pred_check
      _
    $region7: #{tpu_custom_call.1} parent=1 // pred_check_branch
      %25 = sbr.rel (0) target = $region9
    $region8: #{tpu_custom_call.1} parent=1 // pred_region
      %27 = vsyncadd [#allocation6], 0
      %s28 = sshll.u32 %s1, 4
      %s29 = int_to_ptr.hbm [resolvable:$true] %s28
      %s30 = sshll.u32 [#allocation5], 4
      %s31 = int_to_ptr.vmem [resolvable:$true] %s30
      %36 = dma.hbm_to_vmem [thread:$0]  %s29, 2048, %s31, [#allocation6], 128, 128, 8
    $region9: #{tpu_custom_call.1} parent=1 // pred_fallthru
      _
    // Predicated region
    $region10: #{tpu_custom_call.1} parent=1 // pred_check
      _
    $region11: #{tpu_custom_call.1} parent=1 // pred_check_branch
      %38 = sbr.rel (0) target = $region13
    $region12: #{tpu_custom_call.1} parent=1 // pred_region
      %40 = vsyncadd [#allocation6], 0
      %s41 = sshll.u32 %s2, 4
      %s42 = int_to_ptr.hbm [resolvable:$true] %s41
      %s43 = sshll.u32 [#allocation7], 4
      %s44 = int_to_ptr.vmem [resolvable:$true] %s43
      %49 = dma.hbm_to_vmem [thread:$0]  %s42, 2048, %s44, [#allocation6], 128, 128, 8
    $region13: #{tpu_custom_call.1} parent=1 // pred_fallthru
      _
    // Predicated region
    $region14: #{tpu_custom_call.1} parent=1 // pred_check
      _
    $region15: #{tpu_custom_call.1} parent=1 // pred_check_branch
      %51 = sbr.rel (0) target = $region17
    $region16: #{tpu_custom_call.1} parent=1 // pred_region
      %53 = dma.done [#allocation3], 512
    $region17: #{tpu_custom_call.1} parent=1 // pred_fallthru
      _
    // Predicated region
    $region18: #{tpu_custom_call.1} parent=1 // pred_check
      _
    $region19: #{tpu_custom_call.1} parent=1 // pred_check_branch
      %55 = sbr.rel (0) target = $region21
    $region20: #{tpu_custom_call.1} parent=1 // pred_region
      %57 = dma.done [#allocation6], 2048
    $region21: #{tpu_custom_call.1} parent=1 // pred_fallthru
      _
    // Predicated region
    $region22: #{tpu_custom_call.1} parent=1 // pred_check
      _
    $region23: #{tpu_custom_call.1} parent=1 // pred_check_branch
      %59 = sbr.rel (0) target = $region25
    $region24: #{tpu_custom_call.1} parent=1 // pred_region
      %61 = dma.done [#allocation6], 2048
    $region25: #{tpu_custom_call.1} parent=1 // pred_fallthru
      _
    %v62 = vld [vmem:[#allocation2] sm:$0xff]
    %v63 = vld [vmem:[#allocation2 + $0x8] sm:$0xff]
    %v64 = vld [vmem:[#allocation2 + $0x10] sm:$0xff]
    %v65 = vld [vmem:[#allocation2 + $0x18] sm:$0xff]
    %v66 = vadd.f32 %v62, %v63
    %v67 = vrot.slane %v66, 4
    %v68 = vadd.f32 %v66, %v67
    %v69 = vrot.slane %v68, 2
    %v70 = vadd.f32 %v68, %v69
    %v71 = vrot.slane %v70, 1
    %v72 = vadd.f32 %v70, %v71
    %v73 = vadd.f32 %v64, %v65
    %v74 = vrot.slane %v73, 4
    %v75 = vadd.f32 %v73, %v74
    %v76 = vrot.slane %v75, 2
    %v77 = vadd.f32 %v75, %v76
    %v78 = vrot.slane %v77, 1
    %v79 = vadd.f32 %v77, %v78
    %v80 = vld [vmem:[#allocation5] sm:$0xff]
    %v81 = vld [vmem:[#allocation5 + $0x8] sm:$0xff]
    %v82 = vld [vmem:[#allocation5 + $0x10] sm:$0xff]
    %v83 = vld [vmem:[#allocation5 + $0x18] sm:$0xff]
    %v84 = vld [vmem:[#allocation5 + $0x20] sm:$0xff]
    %v85 = vld [vmem:[#allocation5 + $0x28] sm:$0xff]
    %v86 = vld [vmem:[#allocation5 + $0x30] sm:$0xff]
    %v87 = vld [vmem:[#allocation5 + $0x38] sm:$0xff]
    %v88 = vld [vmem:[#allocation5 + $0x40] sm:$0xff]
    %v89 = vld [vmem:[#allocation5 + $0x48] sm:$0xff]
    %v90 = vld [vmem:[#allocation5 + $0x50] sm:$0xff]
    %v91 = vld [vmem:[#allocation5 + $0x58] sm:$0xff]
    %v92 = vld [vmem:[#allocation5 + $0x60] sm:$0xff]
    %v93 = vld [vmem:[#allocation5 + $0x68] sm:$0xff]
    %v94 = vld [vmem:[#allocation5 + $0x70] sm:$0xff]
    %v95 = vld [vmem:[#allocation5 + $0x78] sm:$0xff]
    %vm98 = vcmask 1041409
    %v99 = vsel %vm98, %v79, %v72
    %101 = vmatpush.msra.mxu0 %v95
    %102 = vmatpush.msra.mxu0 %v94
    %103 = vmatpush.msra.mxu0 %v93
    %104 = vmatpush.msra.mxu0 %v92
    %105 = vmatpush.msra.mxu0 %v91
    %106 = vmatpush.msra.mxu0 %v90
    %107 = vmatpush.msra.mxu0 %v89
    %108 = vmatpush.msra.mxu0 %v88
    %109 = vmatpush.msra.mxu0 %v87
    %110 = vmatpush.msra.mxu0 %v86
    %111 = vmatpush.msra.mxu0 %v85
    %112 = vmatpush.msra.mxu0 %v84
    %113 = vmatpush.msra.mxu0 %v83
    %114 = vmatpush.msra.mxu0 %v82
    %115 = vmatpush.msra.mxu0 %v81
    %116 = vmatpush.msra.mxu0 %v80
    %117 = vmatmul.f32.gmra.mxu0 %v99
    %v118 = vpop.f32.mrf.mxu0
    %v119 = vadd.f32 0.0, %v118
    %120 = vdwg.mxu0
    %v121 = vmax.f32 %v119, 0.0
    %v122 = vld [vmem:[#allocation7] sm:$0xff]
    %v123 = vld [vmem:[#allocation7 + $0x8] sm:$0xff]
    %v124 = vld [vmem:[#allocation7 + $0x10] sm:$0xff]
    %v125 = vld [vmem:[#allocation7 + $0x18] sm:$0xff]
    %v126 = vld [vmem:[#allocation7 + $0x20] sm:$0xff]
    %v127 = vld [vmem:[#allocation7 + $0x28] sm:$0xff]
    %v128 = vld [vmem:[#allocation7 + $0x30] sm:$0xff]
    %v129 = vld [vmem:[#allocation7 + $0x38] sm:$0xff]
    %v130 = vld [vmem:[#allocation7 + $0x40] sm:$0xff]
    %v131 = vld [vmem:[#allocation7 + $0x48] sm:$0xff]
    %v132 = vld [vmem:[#allocation7 + $0x50] sm:$0xff]
    %v133 = vld [vmem:[#allocation7 + $0x58] sm:$0xff]
    %v134 = vld [vmem:[#allocation7 + $0x60] sm:$0xff]
    %v135 = vld [vmem:[#allocation7 + $0x68] sm:$0xff]
    %v136 = vld [vmem:[#allocation7 + $0x70] sm:$0xff]
    %v137 = vld [vmem:[#allocation7 + $0x78] sm:$0xff]
    %138 = vmatpush.msra.mxu0 %v137
    %139 = vmatpush.msra.mxu0 %v136
    %140 = vmatpush.msra.mxu0 %v135
    %141 = vmatpush.msra.mxu0 %v134
    %142 = vmatpush.msra.mxu0 %v133
    %143 = vmatpush.msra.mxu0 %v132
    %144 = vmatpush.msra.mxu0 %v131
    %145 = vmatpush.msra.mxu0 %v130
    %146 = vmatpush.msra.mxu0 %v129
    %147 = vmatpush.msra.mxu0 %v128
    %148 = vmatpush.msra.mxu0 %v127
    %149 = vmatpush.msra.mxu0 %v126
    %150 = vmatpush.msra.mxu0 %v125
    %151 = vmatpush.msra.mxu0 %v124
    %152 = vmatpush.msra.mxu0 %v123
    %153 = vmatpush.msra.mxu0 %v122
    %154 = vmatmul.f32.gmra.mxu0 %v121
    %v155 = vpop.f32.mrf.mxu0
    %v156 = vadd.f32 0.0, %v155
    %157 = vdwg.mxu0
    %v158 = vxor.u32 %v156, 2147483648
    %v159 = vmul.f32 %v158, 1.442695
    %v160 = vpow.pop %v159
    %v161 = vadd.f32 %v160, 1.0
    %v162 = vrcp.pop %v161
    %v163 = vmul.f32 %v161, %v162
    %v164 = vsub.f32 1.0, %v163
    %v165 = vmul.f32 %v162, %v164
    %v166 = vadd.f32 %v162, %v165
    %vm167 = vweird.f32 %v161
    %vm168 = vweird.f32 %v162
    %vm169 = vmor %vm167, %vm168
    %v170 = vsel %vm169, %v162, %v166
    %v171 = vand.u32 2147483647, %v161
    %vm172 = vcmp.eq.f32.partialorder %v171, 8.507059e+37
    %v173 = vand.u32 %v161, 2147483648
    %v174 = vor.u32 1.1754944e-38, %v173
    %v175 = vsel %vm172, %v174, %v170
    %v176 = vmul.f32 1.0, %v175
    %v178 = vrot.slane %v176, 1
    %v179 = vperm.slane %v176, 0
    %v180 = vperm.slane %v178, 0
    %v183 = vmul.f32 %v62, %v179
    %v184 = vmul.f32 %v63, %v179
    %v185 = vmul.f32 %v64, %v180
    %v186 = vmul.f32 %v65, %v180
    %187 = vst [vmem:[#allocation8] sm:$0xff] %v183
    %188 = vst [vmem:[#allocation8 + $0x8] sm:$0xff] %v184
    %189 = vst [vmem:[#allocation8 + $0x10] sm:$0xff] %v185
    %190 = vst [vmem:[#allocation8 + $0x18] sm:$0xff] %v186
    // Predicated region
    $region26: #{tpu_custom_call.1} parent=1 // pred_check
      _
    $region27: #{tpu_custom_call.1} parent=1 // pred_check_branch
      %192 = sbr.rel (0) target = $region29
    $region28: #{tpu_custom_call.1} parent=1 // pred_region
      %194 = vsyncadd [#allocation4], 0
      %s195 = sshll.u32 [#allocation8], 4
      %s196 = int_to_ptr.vmem [resolvable:$true] %s195
      %s197 = sshll.u32 %s3, 4
      %s198 = int_to_ptr.hbm [resolvable:$true] %s197
      %203 = dma.vmem_to_hbm [thread:$0]  %s196, 512, %s198, [#allocation4], 128, 128, 8
    $region29: #{tpu_custom_call.1} parent=1 // pred_fallthru
      _
    // Predicated region
    $region30: #{tpu_custom_call.1} parent=1 // pred_check
      _
    $region31: #{tpu_custom_call.1} parent=1 // pred_check_branch
      %205 = sbr.rel (0) target = $region33
    $region32: #{tpu_custom_call.1} parent=1 // pred_region
      %207 = dma.done [#allocation4], 512
    $region33: #{tpu_custom_call.1} parent=1 // pred_fallthru
      _
    %208 = vsyncpa [#allocation3], 1
    %209 = vsyncpa [#allocation6], 1
    %210 = vsyncpa [#allocation4], 1

</llo_original>
